<compile_context>
chip_gen: v6e
topology: v6e:2x2x1
jax: 0.10.0
libtpu: 0.0.40
codegen_flags: <defaults>
</compile_context>

<pallas_src>
import functools

import jax
import jax.numpy as jnp
from jax.experimental import pallas as pl
from jax.experimental.pallas import tpu as pltpu

INPUT_SIZE = 512
HIDDEN = (128, 32)

# Cap on rows of `h` per grid step.  ~24 MiB peak VMEM at 4096 (fits every generation with
# the explicit 48 MiB scoped limit below).  The tile is auto-split so the grid has >= 2
# steps for large batches (v7x: 2 TensorCores share the "parallel" axis).
DEFAULT_BATCH_TILE = 4096
_VMEM_LIMIT_BYTES = 48 * 1024 * 1024


def _round_up(x, m):
    return (x + m - 1) // m * m


def _cdiv(a, b):
    return (a + b - 1) // b


def _supports_bf16_eup():
    """bf16 transcendental path exists on v6e/v7x; not on v5e and older."""
    try:
        kind = jax.devices()[0].device_kind.lower()
        return not any(v in kind for v in ("v2", "v3", "v4", "v5"))
    except Exception:  # pragma: no cover - conservative fallback
        return False


def _choose_tile(batch, batch_tile):
    batch_tile = max(16, _round_up(int(batch_tile), 16))     # bf16 sublane packing: x16
    tb = min(batch_tile, _round_up(batch, 16))
    # Prefer >= 2 grid steps when the batch is large enough that each half-tile still
    # dwarfs the ~0.35us per-step pipeline overhead (keeps both v7x TensorCores busy).
    if tb >= 1024 and _round_up(batch, 16) <= tb:
        tb = _round_up(_cdiv(batch, 2), 16)
    return tb


def propnet_kernel(h_ref, w1_ref, b1_ref, w2_ref, b2_ref, w3_ref, b3_ref, o_ref,
                   *, bf16_tanh):
    # Small resident params, read once per tile.
    b1 = b1_ref[...]          # (1, 128) f32
    b2 = b2_ref[...]          # (1, 32)  f32
    b3 = b3_ref[...]          # (1, 1)   f32
    w3 = w3_ref[...]          # (1, 32)  bf16

    # Layer 1: cast streamed f32 rows to bf16 under the DMA, MXU dot with f32 accumulate.
    h_bf = h_ref[...].astype(jnp.bfloat16)                               # (tb, 512)
    acc1 = jnp.dot(h_bf, w1_ref[...], preferred_element_type=jnp.float32) + b1
    if bf16_tanh:
        x1 = jnp.tanh(acc1.astype(jnp.bfloat16))                         # bf16 EUP
    else:
        x1 = jnp.tanh(acc1).astype(jnp.bfloat16)                         # f32 EUP (v5e)

    # Layer 2.
    acc2 = jnp.dot(x1, w2_ref[...], preferred_element_type=jnp.float32) + b2
    if bf16_tanh:
        x2 = jnp.tanh(acc2.astype(jnp.bfloat16))                         # (tb, 32) bf16
    else:
        x2 = jnp.tanh(acc2).astype(jnp.bfloat16)

    # Layer 3 (32 -> 1), computed transposed so the per-tile result is lane-dense (1, tb):
    #   out[0, r] = sum_k w3[0, k] * x2[r, k]
    out_row = jax.lax.dot_general(
        w3, x2, dimension_numbers=(((1,), (1,)), ((), ())),
        preferred_element_type=jnp.float32) + b3                          # (1, tb) f32
    o_ref[0] = out_row.astype(o_ref.dtype)


@functools.partial(jax.jit, static_argnames=("batch_tile", "bf16_tanh"))
def _propnet_forward_impl(h, w1, b1, w2, b2, w3, b3, *, batch_tile, bf16_tanh):
    B, D = h.shape
    H1 = w1.shape[1]
    H2 = w2.shape[1]
    assert D == w1.shape[0]

    tb = _choose_tile(B, batch_tile)
    num_tiles = _cdiv(B, tb)          # no padding copy: Pallas masks the ragged tail tile
    Bp = num_tiles * tb

    # Weights resident in VMEM as bf16 (halves their HBM footprint); biases stay f32.
    w1_bf = w1.astype(jnp.bfloat16)
    w2_bf = w2.astype(jnp.bfloat16)
    w3_row = w3.astype(jnp.bfloat16).reshape(1, H2)    # (1, 32) row for the NT final dot
    b1_f = b1.astype(jnp.float32).reshape(1, H1)
    b2_f = b2.astype(jnp.float32).reshape(1, H2)
    b3_f = b3.astype(jnp.float32).reshape(1, 1)

    # Whole-array, single-buffered VMEM residents (no pointless double-buffering).
    resident = pl.BlockSpec(memory_space=pltpu.MemorySpace.VMEM)

    cost = pl.CostEstimate(
        flops=2 * Bp * (D * H1 + H1 * H2 + H2),
        transcendentals=Bp * (H1 + H2),
        bytes_accessed=(B * D * 4 + B * 4                      # h (f32 in) + output (f32)
                        + D * H1 * 2 + H1 * 4                  # w1 (bf16) + b1
                        + H1 * H2 * 2 + H2 * 4                 # w2 (bf16) + b2
                        + H2 * 2 + 4),                         # w3 + b3
    )

    out = pl.pallas_call(
        functools.partial(propnet_kernel, bf16_tanh=bf16_tanh),
        out_shape=jax.ShapeDtypeStruct((num_tiles, 1, tb), jnp.float32),
        grid_spec=pltpu.PrefetchScalarGridSpec(
            num_scalar_prefetch=0,
            grid=(num_tiles,),
            in_specs=[
                pl.BlockSpec((tb, D), lambda i: (i, 0)),   # h tile: pipelined f32 stream
                resident, resident,                        # w1, b1
                resident, resident,                        # w2, b2
                resident, resident,                        # w3 (row), b3
            ],
            # Lane-dense output block: last two dims (1, tb) equal the full array dims.
            out_specs=pl.BlockSpec((1, 1, tb), lambda i: (i, 0, 0)),
        ),
        compiler_params=pltpu.CompilerParams(
            dimension_semantics=("parallel",),
            vmem_limit_bytes=_VMEM_LIMIT_BYTES,
        ),
        cost_estimate=cost,
    )(h, w1_bf, b1_f, w2_bf, b2_f, w3_row, b3_f)

    # Pure layout plumbing back to the PyTorch-shaped (B, 1) output.
    return out.reshape(Bp, 1)[:B]


def propnet_forward(h, w1, b1, w2, b2, w3, b3, *,
                    batch_tile=DEFAULT_BATCH_TILE, bf16_tanh=None):
    if bf16_tanh is None:
        bf16_tanh = _supports_bf16_eup()
    return _propnet_forward_impl(h, w1, b1, w2, b2, w3, b3,
                                 batch_tile=int(batch_tile),
                                 bf16_tanh=bool(bf16_tanh))


def init_params(key):
    """Deterministic init mimicking nn.Linear (uniform +/- 1/sqrt(fan_in))."""
    dims = (INPUT_SIZE,) + tuple(HIDDEN) + (1,)
    params = []
    for i in range(len(dims) - 1):
        fan_in, fan_out = dims[i], dims[i + 1]
        key, kw, kb = jax.random.split(key, 3)
        bound = 1.0 / jnp.sqrt(fan_in)
        w = jax.random.uniform(kw, (fan_in, fan_out), jnp.float32, -bound, bound)
        b = jax.random.uniform(kb, (1, fan_out), jnp.float32, -bound, bound)
        params += [w, b]
    return params


def reference_forward_f32(h, w1, b1, w2, b2, w3, b3):
    x = jnp.tanh(h @ w1 + b1)
    x = jnp.tanh(x @ w2 + b2)
    return x @ w3 + b3


def reference_forward_mirrored(h, w1, b1, w2, b2, w3, b3, *, bf16_tanh):
    """Mirrors the kernel's bf16-stream / f32-accumulate numerics."""
    bf = jnp.bfloat16
    a1 = jnp.dot(h.astype(bf), w1.astype(bf), preferred_element_type=jnp.float32) + b1
    x1 = jnp.tanh(a1.astype(bf)) if bf16_tanh else jnp.tanh(a1).astype(bf)
    a2 = jnp.dot(x1, w2.astype(bf), preferred_element_type=jnp.float32) + b2
    x2 = jnp.tanh(a2.astype(bf)) if bf16_tanh else jnp.tanh(a2).astype(bf)
    return jnp.dot(x2, w3.astype(bf), preferred_element_type=jnp.float32) + b3


if __name__ == "__main__":
    key = jax.random.PRNGKey(0)
    key, kh = jax.random.split(key)
    params = init_params(key)
    w1, b1, w2, b2, w3, b3 = params
    bf16_tanh = _supports_bf16_eup()

    # Test 1: small batch, deliberately NOT a multiple of 16 (exercises ragged tail tile).
    B = 20
    h = jax.random.normal(kh, (B, INPUT_SIZE), jnp.float32)
    out = jax.block_until_ready(propnet_forward(h, *params))
    assert out.shape == (B, 1) and out.dtype == jnp.float32

    ref_m = reference_forward_mirrored(h, *params, bf16_tanh=bf16_tanh)
    ref_f = reference_forward_f32(h, *params)
    assert jnp.allclose(out, ref_m, atol=5e-3, rtol=5e-3), "mismatch vs mirrored reference"
    assert jnp.allclose(out, ref_f, atol=7.5e-2, rtol=7.5e-2), "mismatch vs f32 reference"

    # Test 2: multi-tile grid with a ragged tail (200 rows, tile 64 -> 4 steps, tail=8).
    key, kh2 = jax.random.split(key)
    B2 = 200
    h2 = jax.random.normal(kh2, (B2, INPUT_SIZE), jnp.float32)
    out2 = jax.block_until_ready(propnet_forward(h2, *params, batch_tile=64))
    ref2 = reference_forward_mirrored(h2, *params, bf16_tanh=bf16_tanh)
    assert out2.shape == (B2, 1)
    assert jnp.allclose(out2, ref2, atol=5e-3, rtol=5e-3), "mismatch on multi-tile grid"

    # Test 3: explicit f32-tanh path (always safe; exercises the alternate branch).
    out3 = jax.block_until_ready(propnet_forward(h, *params, bf16_tanh=False))
    ref3 = reference_forward_mirrored(h, *params, bf16_tanh=False)
    assert jnp.allclose(out3, ref3, atol=5e-3, rtol=5e-3), "mismatch on f32-tanh path"

    print("KERNEL_OK")
</pallas_src>

<mosaic_0001>
module attributes {stable_mosaic.version = 11 : i64} {
  func.func @propnet_kernel(%arg0: i32, %arg1: memref<32x512xf32, #tpu.memory_space<vmem>>, %arg2: memref<512x128xbf16, #tpu.memory_space<vmem>>, %arg3: memref<1x128xf32, #tpu.memory_space<vmem>>, %arg4: memref<128x32xbf16, #tpu.memory_space<vmem>>, %arg5: memref<1x32xf32, #tpu.memory_space<vmem>>, %arg6: memref<1x32xbf16, #tpu.memory_space<vmem>>, %arg7: memref<1x1xf32, #tpu.memory_space<vmem>>, %arg8: memref<1x1x32xf32, #tpu.memory_space<vmem>>) attributes {dimension_semantics = [#tpu.dimension_semantics<parallel>], iteration_bounds = array<i64: 1>, scalar_prefetch = 0 : i64, scratch_operands = 0 : i64, tpu.core_type = #tpu.core_type<tc>, window_params = [{transform_indices = @transform_0, window_bounds = array<i64: 32, 512>}, {pipeline_mode = #tpu.pipeline_mode<synchronous>, transform_indices = @transform_1, window_bounds = array<i64: 512, 128>}, {pipeline_mode = #tpu.pipeline_mode<synchronous>, transform_indices = @transform_2, window_bounds = array<i64: 1, 128>}, {pipeline_mode = #tpu.pipeline_mode<synchronous>, transform_indices = @transform_3, window_bounds = array<i64: 128, 32>}, {pipeline_mode = #tpu.pipeline_mode<synchronous>, transform_indices = @transform_4, window_bounds = array<i64: 1, 32>}, {pipeline_mode = #tpu.pipeline_mode<synchronous>, transform_indices = @transform_5, window_bounds = array<i64: 1, 32>}, {pipeline_mode = #tpu.pipeline_mode<synchronous>, transform_indices = @transform_6, window_bounds = array<i64: 1, 1>}, {transform_indices = @transform_7, window_bounds = array<i64: 1, 1, 32>}]} {
    %c0 = arith.constant 0 : index
    %c0_0 = arith.constant 0 : index
    %0 = vector.load %arg3[%c0, %c0_0] : memref<1x128xf32, #tpu.memory_space<vmem>>, vector<1x128xf32>
    %c0_1 = arith.constant 0 : index
    %c0_2 = arith.constant 0 : index
    %1 = vector.load %arg5[%c0_1, %c0_2] : memref<1x32xf32, #tpu.memory_space<vmem>>, vector<1x32xf32>
    %c0_3 = arith.constant 0 : index
    %c0_4 = arith.constant 0 : index
    %2 = vector.load %arg7[%c0_3, %c0_4] : memref<1x1xf32, #tpu.memory_space<vmem>>, vector<1x1xf32>
    %c0_5 = arith.constant 0 : index
    %c0_6 = arith.constant 0 : index
    %3 = vector.load %arg6[%c0_5, %c0_6] : memref<1x32xbf16, #tpu.memory_space<vmem>>, vector<1x32xbf16>
    %c0_7 = arith.constant 0 : index
    %c0_8 = arith.constant 0 : index
    %4 = vector.load %arg1[%c0_7, %c0_8] : memref<32x512xf32, #tpu.memory_space<vmem>>, vector<32x512xf32>
    %5 = arith.truncf %4 : vector<32x512xf32> to vector<32x512xbf16>
    %c0_9 = arith.constant 0 : index
    %c0_10 = arith.constant 0 : index
    %6 = vector.load %arg2[%c0_9, %c0_10] : memref<512x128xbf16, #tpu.memory_space<vmem>>, vector<512x128xbf16>
    %cst = arith.constant dense<0.000000e+00> : vector<32x128xf32>
    %7 = tpu.matmul %5, %6, %cst {dimension_numbers = #tpu.dot_dimension_numbers<[1], [0], [0], [1], [0, 0, 1, 1], [], []>} : vector<32x512xbf16>, vector<512x128xbf16>, vector<32x128xf32> -> vector<32x128xf32>
    %8 = vector.broadcast %0 : vector<1x128xf32> to vector<32x128xf32>
    %9 = arith.addf %7, %8 : vector<32x128xf32>
    %10 = arith.truncf %9 : vector<32x128xf32> to vector<32x128xbf16>
    %11 = math.tanh %10 : vector<32x128xbf16>
    %c0_11 = arith.constant 0 : index
    %c0_12 = arith.constant 0 : index
    %12 = vector.load %arg4[%c0_11, %c0_12] : memref<128x32xbf16, #tpu.memory_space<vmem>>, vector<128x32xbf16>
    %cst_13 = arith.constant dense<0.000000e+00> : vector<32x32xf32>
    %13 = tpu.matmul %11, %12, %cst_13 {dimension_numbers = #tpu.dot_dimension_numbers<[1], [0], [0], [1], [0, 0, 1, 1], [], []>} : vector<32x128xbf16>, vector<128x32xbf16>, vector<32x32xf32> -> vector<32x32xf32>
    %14 = vector.broadcast %1 : vector<1x32xf32> to vector<32x32xf32>
    %15 = arith.addf %13, %14 : vector<32x32xf32>
    %16 = arith.truncf %15 : vector<32x32xf32> to vector<32x32xbf16>
    %17 = math.tanh %16 : vector<32x32xbf16>
    %cst_14 = arith.constant dense<0.000000e+00> : vector<1x32xf32>
    %18 = tpu.matmul %3, %17, %cst_14 {dimension_numbers = #tpu.dot_dimension_numbers<[1], [1], [0], [0], [0, 0, 1, 0], [], []>} : vector<1x32xbf16>, vector<32x32xbf16>, vector<1x32xf32> -> vector<1x32xf32>
    %19 = vector.broadcast %2 : vector<1x1xf32> to vector<1x32xf32>
    %20 = arith.addf %18, %19 : vector<1x32xf32>
    %c0_15 = arith.constant 0 : index
    %c0_16 = arith.constant 0 : index
    %c0_17 = arith.constant 0 : index
    %21 = vector.load %arg8[%c0_15, %c0_16, %c0_17] : memref<1x1x32xf32, #tpu.memory_space<vmem>>, vector<1x1x32xf32>
    %22 = vector.shape_cast %21 : vector<1x1x32xf32> to vector<1x32xf32>
    %23 = vector.shape_cast %20 : vector<1x32xf32> to vector<1x1x32xf32>
    tpu.vector_store %arg8[%c0_15, %c0_16, %c0_17], %23 {strides = array<i32>} : memref<1x1x32xf32, #tpu.memory_space<vmem>>, vector<1x1x32xf32>,
    return
  }
  func.func @transform_0(%arg0: i32) -> (i32, i32) {
    %c0_i32 = arith.constant 0 : i32
    %c0_i32_0 = arith.constant 0 : i32
    return %arg0, %c0_i32 : i32, i32
  }
  func.func @transform_1(%arg0: i32) -> (i32, i32) {
    %c0_i32 = arith.constant 0 : i32
    %c0_i32_0 = arith.constant 0 : i32
    %c0_i32_1 = arith.constant 0 : i32
    return %c0_i32, %c0_i32_0 : i32, i32
  }
  func.func @transform_2(%arg0: i32) -> (i32, i32) {
    %c0_i32 = arith.constant 0 : i32
    %c0_i32_0 = arith.constant 0 : i32
    %c0_i32_1 = arith.constant 0 : i32
    return %c0_i32, %c0_i32_0 : i32, i32
  }
  func.func @transform_3(%arg0: i32) -> (i32, i32) {
    %c0_i32 = arith.constant 0 : i32
    %c0_i32_0 = arith.constant 0 : i32
    %c0_i32_1 = arith.constant 0 : i32
    return %c0_i32, %c0_i32_0 : i32, i32
  }
  func.func @transform_4(%arg0: i32) -> (i32, i32) {
    %c0_i32 = arith.constant 0 : i32
    %c0_i32_0 = arith.constant 0 : i32
    %c0_i32_1 = arith.constant 0 : i32
    return %c0_i32, %c0_i32_0 : i32, i32
  }
  func.func @transform_5(%arg0: i32) -> (i32, i32) {
    %c0_i32 = arith.constant 0 : i32
    %c0_i32_0 = arith.constant 0 : i32
    %c0_i32_1 = arith.constant 0 : i32
    return %c0_i32, %c0_i32_0 : i32, i32
  }
  func.func @transform_6(%arg0: i32) -> (i32, i32) {
    %c0_i32 = arith.constant 0 : i32
    %c0_i32_0 = arith.constant 0 : i32
    %c0_i32_1 = arith.constant 0 : i32
    return %c0_i32, %c0_i32_0 : i32, i32
  }
  func.func @transform_7(%arg0: i32) -> (i32, i32, i32) {
    %c0_i32 = arith.constant 0 : i32
    %c0_i32_0 = arith.constant 0 : i32
    %c0_i32_1 = arith.constant 0 : i32
    return %arg0, %c0_i32, %c0_i32_0 : i32, i32, i32
  }
}

</mosaic_0001>

<llo_original>
// kernel: _propnet_forward_impl.1
$region0: #{_propnet_forward_impl.1}
  #allocation0 [shape = 'u32[]', space=smem, size = 0x4, offset = 0x4, fixed_abs, tag = 'smem constant byte address 0x4 - core index']
  #allocation1 [shape = 'u32[144,128]{1,0:T(1,128)}', space=vmem, size = 0x12000, scoped, tag = 'internal scratch']
  #allocation2 [shape = 'f32[1,1]{1,0:T(1,128)S(1)}', space=vmem, size = 0x200, scoped, tag = 'scoped memory for _propnet_forward_impl.1']
  %s0 = inlined_call_operand.vmem [shape: f32[20,512], index: 0, kind: input, shape index: {}]
  %s1 = inlined_call_operand.vmem [shape: bf16[512,128], index: 1, kind: input, shape index: {}]
  %s2 = inlined_call_operand.vmem [shape: f32[1,128], index: 2, kind: input, shape index: {}]
  %s3 = inlined_call_operand.vmem [shape: bf16[128,32], index: 3, kind: input, shape index: {}]
  %s4 = inlined_call_operand.vmem [shape: f32[1,32], index: 4, kind: input, shape index: {}]
  %s5 = inlined_call_operand.vmem [shape: bf16[1,32], index: 5, kind: input, shape index: {}]
  %s6 = inlined_call_operand.<no memory space> [shape: f32[1,1], index: 6, kind: input, shape index: {}]
  %s7 = inlined_call_operand.vmem [shape: f32[1,1,32], index: 7, kind: output, shape index: {}]
  %s8 = sld [smem:[#allocation0]]
  $region38: #{_propnet_forward_impl.1} parent=0
    _
  %s10 = ssub.s32 1, %s8
  %s11 = scalar_select 0, %s10, %s8
  %v12 = vstv %s6
  %13 = vst [vmem:[#allocation2] sm:$0x1] %v12
  // Predicated region
  $region2: #{_propnet_forward_impl.1} parent=0 // pred_check
    _
  $region3: #{_propnet_forward_impl.1} parent=0 // pred_check_branch
    %15 = sbr.rel (0) target = $region5
  $region4: #{_propnet_forward_impl.1} parent=0 // pred_region
    _
  $region5: #{_propnet_forward_impl.1} parent=0 // pred_fallthru
    _
  // Predicated region
  $region6: #{_propnet_forward_impl.1} parent=0 // pred_check
    _
  $region7: #{_propnet_forward_impl.1} parent=0 // pred_check_branch
    %17 = sbr.rel (0) target = $region9
  $region8: #{_propnet_forward_impl.1} parent=0 // pred_region
    _
  $region9: #{_propnet_forward_impl.1} parent=0 // pred_fallthru
    _
  // Predicated region
  $region10: #{_propnet_forward_impl.1} parent=0 // pred_check
    _
  $region11: #{_propnet_forward_impl.1} parent=0 // pred_check_branch
    %19 = sbr.rel (0) target = $region13
  $region12: #{_propnet_forward_impl.1} parent=0 // pred_region
    _
  $region13: #{_propnet_forward_impl.1} parent=0 // pred_fallthru
    _
  // Predicated region
  $region14: #{_propnet_forward_impl.1} parent=0 // pred_check
    _
  $region15: #{_propnet_forward_impl.1} parent=0 // pred_check_branch
    %21 = sbr.rel (0) target = $region17
  $region16: #{_propnet_forward_impl.1} parent=0 // pred_region
    _
  $region17: #{_propnet_forward_impl.1} parent=0 // pred_fallthru
    _
  // Predicated region
  $region18: #{_propnet_forward_impl.1} parent=0 // pred_check
    _
  $region19: #{_propnet_forward_impl.1} parent=0 // pred_check_branch
    %23 = sbr.rel (0) target = $region21
  $region20: #{_propnet_forward_impl.1} parent=0 // pred_region
    _
  $region21: #{_propnet_forward_impl.1} parent=0 // pred_fallthru
    _
  // Predicated region
  $region22: #{_propnet_forward_impl.1} parent=0 // pred_check
    _
  $region23: #{_propnet_forward_impl.1} parent=0 // pred_check_branch
    %25 = sbr.rel (0) target = $region25
  $region24: #{_propnet_forward_impl.1} parent=0 // pred_region
    _
  $region25: #{_propnet_forward_impl.1} parent=0 // pred_fallthru
    _
  // Predicated region
  $region26: #{_propnet_forward_impl.1} parent=0 // pred_check
    _
  $region27: #{_propnet_forward_impl.1} parent=0 // pred_check_branch
    %27 = sbr.rel (0) target = $region29
  $region28: #{_propnet_forward_impl.1} parent=0 // pred_region
    _
  $region29: #{_propnet_forward_impl.1} parent=0 // pred_fallthru
    _
  %v29 = vld [vmem:[%s2] sm:$0x1]
  %v30 = vld [vmem:[%s4] sm:$0x1]
  %v31 = vld [vmem:[#allocation2] sm:$0x1]
  %v32 = vld [vmem:[%s5] sm:$0x1]
  %v33 = vld [vmem:[%s0] sm:$0xff]
  %v34 = vld [vmem:[%s0 + $0x8] sm:$0xff]
  %v35 = vld [vmem:[%s0 + $0x10] sm:$0xff]
  %v36 = vld [vmem:[%s0 + $0x18] sm:$0xff]
  %v37 = vld [vmem:[%s0 + $0x20] sm:$0xff]
  %v38 = vld [vmem:[%s0 + $0x28] sm:$0xff]
  %v39 = vld [vmem:[%s0 + $0x30] sm:$0xff]
  %v40 = vld [vmem:[%s0 + $0x38] sm:$0xff]
  %v41 = vld [vmem:[%s0 + $0x40] sm:$0xff]
  %v42 = vld [vmem:[%s0 + $0x48] sm:$0xff]
  %v43 = vld [vmem:[%s0 + $0x50] sm:$0xff]
  %v44 = vld [vmem:[%s0 + $0x58] sm:$0xff]
  %v45 = vld [vmem:[%s0 + $0x60] sm:$0xff]
  %v46 = vld [vmem:[%s0 + $0x68] sm:$0xff]
  %v47 = vld [vmem:[%s0 + $0x70] sm:$0xff]
  %v48 = vld [vmem:[%s0 + $0x78] sm:$0xff]
  %v49 = vpack.c.bf16 %v37, %v33
  %v50 = vpack.c.bf16 %v38, %v34
  %v51 = vpack.c.bf16 %v39, %v35
  %v52 = vpack.c.bf16 %v40, %v36
  %v53 = vpack.c.bf16 %v45, %v41
  %v54 = vpack.c.bf16 %v46, %v42
  %v55 = vpack.c.bf16 %v47, %v43
  %v56 = vpack.c.bf16 %v48, %v44
  %v57 = vld [vmem:[%s1] sm:$0xf]
  %v58 = vld [vmem:[%s1 + $0x4] sm:$0xf]
  %v59 = vld [vmem:[%s1 + $0x8] sm:$0xf]
  %v60 = vld [vmem:[%s1 + $0xc] sm:$0xf]
  %v61 = vld [vmem:[%s1 + $0x10] sm:$0xf]
  %v62 = vld [vmem:[%s1 + $0x14] sm:$0xf]
  %v63 = vld [vmem:[%s1 + $0x18] sm:$0xf]
  %v64 = vld [vmem:[%s1 + $0x1c] sm:$0xf]
  %v65 = vld [vmem:[%s1 + $0x20] sm:$0xf]
  %v66 = vld [vmem:[%s1 + $0x24] sm:$0xf]
  %v67 = vld [vmem:[%s1 + $0x28] sm:$0xf]
  %v68 = vld [vmem:[%s1 + $0x2c] sm:$0xf]
  %v69 = vld [vmem:[%s1 + $0x30] sm:$0xf]
  %v70 = vld [vmem:[%s1 + $0x34] sm:$0xf]
  %v71 = vld [vmem:[%s1 + $0x38] sm:$0xf]
  %v72 = vld [vmem:[%s1 + $0x3c] sm:$0xf]
  %v73 = vld [vmem:[%s1 + $0x40] sm:$0xf]
  %v74 = vld [vmem:[%s1 + $0x44] sm:$0xf]
  %v75 = vld [vmem:[%s1 + $0x48] sm:$0xf]
  %v76 = vld [vmem:[%s1 + $0x4c] sm:$0xf]
  %v77 = vld [vmem:[%s1 + $0x50] sm:$0xf]
  %v78 = vld [vmem:[%s1 + $0x54] sm:$0xf]
  %v79 = vld [vmem:[%s1 + $0x58] sm:$0xf]
  %v80 = vld [vmem:[%s1 + $0x5c] sm:$0xf]
  %v81 = vld [vmem:[%s1 + $0x60] sm:$0xf]
  %v82 = vld [vmem:[%s1 + $0x64] sm:$0xf]
  %v83 = vld [vmem:[%s1 + $0x68] sm:$0xf]
  %v84 = vld [vmem:[%s1 + $0x6c] sm:$0xf]
  %v85 = vld [vmem:[%s1 + $0x70] sm:$0xf]
  %v86 = vld [vmem:[%s1 + $0x74] sm:$0xf]
  %v87 = vld [vmem:[%s1 + $0x78] sm:$0xf]
  %v88 = vld [vmem:[%s1 + $0x7c] sm:$0xf]
  %v89 = vld [vmem:[%s1 + $0x80] sm:$0xf]
  %v90 = vld [vmem:[%s1 + $0x84] sm:$0xf]
  %v91 = vld [vmem:[%s1 + $0x88] sm:$0xf]
  %v92 = vld [vmem:[%s1 + $0x8c] sm:$0xf]
  %v93 = vld [vmem:[%s1 + $0x90] sm:$0xf]
  %v94 = vld [vmem:[%s1 + $0x94] sm:$0xf]
  %v95 = vld [vmem:[%s1 + $0x98] sm:$0xf]
  %v96 = vld [vmem:[%s1 + $0x9c] sm:$0xf]
  %v97 = vld [vmem:[%s1 + $0xa0] sm:$0xf]
  %v98 = vld [vmem:[%s1 + $0xa4] sm:$0xf]
  %v99 = vld [vmem:[%s1 + $0xa8] sm:$0xf]
  %v100 = vld [vmem:[%s1 + $0xac] sm:$0xf]
  %v101 = vld [vmem:[%s1 + $0xb0] sm:$0xf]
  %v102 = vld [vmem:[%s1 + $0xb4] sm:$0xf]
  %v103 = vld [vmem:[%s1 + $0xb8] sm:$0xf]
  %v104 = vld [vmem:[%s1 + $0xbc] sm:$0xf]
  %v105 = vld [vmem:[%s1 + $0xc0] sm:$0xf]
  %v106 = vld [vmem:[%s1 + $0xc4] sm:$0xf]
  %v107 = vld [vmem:[%s1 + $0xc8] sm:$0xf]
  %v108 = vld [vmem:[%s1 + $0xcc] sm:$0xf]
  %v109 = vld [vmem:[%s1 + $0xd0] sm:$0xf]
  %v110 = vld [vmem:[%s1 + $0xd4] sm:$0xf]
  %v111 = vld [vmem:[%s1 + $0xd8] sm:$0xf]
  %v112 = vld [vmem:[%s1 + $0xdc] sm:$0xf]
  %v113 = vld [vmem:[%s1 + $0xe0] sm:$0xf]
  %v114 = vld [vmem:[%s1 + $0xe4] sm:$0xf]
  %v115 = vld [vmem:[%s1 + $0xe8] sm:$0xf]
  %v116 = vld [vmem:[%s1 + $0xec] sm:$0xf]
  %v117 = vld [vmem:[%s1 + $0xf0] sm:$0xf]
  %v118 = vld [vmem:[%s1 + $0xf4] sm:$0xf]
  %v119 = vld [vmem:[%s1 + $0xf8] sm:$0xf]
  %v120 = vld [vmem:[%s1 + $0xfc] sm:$0xf]
  %v122 = vlaneseq
  %v123 = vshrl.u32 %v122, 7
  %v124 = vsub.s32 0, %v123
  %v125 = vrot.slane %v29, %v124
  %v191 = vunpack.c.l.b16 %v57
  %v192 = vunpack.c.l.b16 %v58
  %v193 = vunpack.c.l.b16 %v59
  %v194 = vunpack.c.l.b16 %v60
  %v195 = vunpack.c.l.b16 %v61
  %v196 = vunpack.c.l.b16 %v62
  %v197 = vunpack.c.l.b16 %v63
  %v198 = vunpack.c.l.b16 %v64
  %v199 = vunpack.c.l.b16 %v65
  %v200 = vunpack.c.l.b16 %v66
  %v201 = vunpack.c.l.b16 %v67
  %v202 = vunpack.c.l.b16 %v68
  %v203 = vunpack.c.l.b16 %v69
  %v204 = vunpack.c.l.b16 %v70
  %v205 = vunpack.c.l.b16 %v71
  %v206 = vunpack.c.l.b16 %v72
  %v207 = vunpack.c.l.b16 %v73
  %v208 = vunpack.c.l.b16 %v74
  %v209 = vunpack.c.l.b16 %v75
  %v210 = vunpack.c.l.b16 %v76
  %v211 = vunpack.c.l.b16 %v77
  %v212 = vunpack.c.l.b16 %v78
  %v213 = vunpack.c.l.b16 %v79
  %v214 = vunpack.c.l.b16 %v80
  %v215 = vunpack.c.l.b16 %v81
  %v216 = vunpack.c.l.b16 %v82
  %v217 = vunpack.c.l.b16 %v83
  %v218 = vunpack.c.l.b16 %v84
  %v219 = vunpack.c.l.b16 %v85
  %v220 = vunpack.c.l.b16 %v86
  %v221 = vunpack.c.l.b16 %v87
  %v222 = vunpack.c.l.b16 %v88
  %v223 = vunpack.c.l.b16 %v89
  %v224 = vunpack.c.l.b16 %v90
  %v225 = vunpack.c.l.b16 %v91
  %v226 = vunpack.c.l.b16 %v92
  %v227 = vunpack.c.l.b16 %v93
  %v228 = vunpack.c.l.b16 %v94
  %v229 = vunpack.c.l.b16 %v95
  %v230 = vunpack.c.l.b16 %v96
  %v231 = vunpack.c.l.b16 %v97
  %v232 = vunpack.c.l.b16 %v98
  %v233 = vunpack.c.l.b16 %v99
  %v234 = vunpack.c.l.b16 %v100
  %v235 = vunpack.c.l.b16 %v101
  %v236 = vunpack.c.l.b16 %v102
  %v237 = vunpack.c.l.b16 %v103
  %v238 = vunpack.c.l.b16 %v104
  %v239 = vunpack.c.l.b16 %v105
  %v240 = vunpack.c.l.b16 %v106
  %v241 = vunpack.c.l.b16 %v107
  %v242 = vunpack.c.l.b16 %v108
  %v243 = vunpack.c.l.b16 %v109
  %v244 = vunpack.c.l.b16 %v110
  %v245 = vunpack.c.l.b16 %v111
  %v246 = vunpack.c.l.b16 %v112
  %v247 = vunpack.c.l.b16 %v113
  %v248 = vunpack.c.l.b16 %v114
  %v249 = vunpack.c.l.b16 %v115
  %v250 = vunpack.c.l.b16 %v116
  %v251 = vunpack.c.l.b16 %v117
  %v252 = vunpack.c.l.b16 %v118
  %v253 = vunpack.c.l.b16 %v119
  %v254 = vunpack.c.l.b16 %v120
  %v255 = vpack.c.b16 %v192, %v191
  %v256 = vpack.c.b16 %v194, %v193
  %v257 = vpack.c.b16 %v196, %v195
  %v258 = vpack.c.b16 %v198, %v197
  %v259 = vpack.c.b16 %v200, %v199
  %v260 = vpack.c.b16 %v202, %v201
  %v261 = vpack.c.b16 %v204, %v203
  %v262 = vpack.c.b16 %v206, %v205
  %v263 = vpack.c.b16 %v208, %v207
  %v264 = vpack.c.b16 %v210, %v209
  %v265 = vpack.c.b16 %v212, %v211
  %v266 = vpack.c.b16 %v214, %v213
  %v267 = vpack.c.b16 %v216, %v215
  %v268 = vpack.c.b16 %v218, %v217
  %v269 = vpack.c.b16 %v220, %v219
  %v270 = vpack.c.b16 %v222, %v221
  %v271 = vpack.c.b16 %v224, %v223
  %v272 = vpack.c.b16 %v226, %v225
  %v273 = vpack.c.b16 %v228, %v227
  %v274 = vpack.c.b16 %v230, %v229
  %v275 = vpack.c.b16 %v232, %v231
  %v276 = vpack.c.b16 %v234, %v233
  %v277 = vpack.c.b16 %v236, %v235
  %v278 = vpack.c.b16 %v238, %v237
  %v279 = vpack.c.b16 %v240, %v239
  %v280 = vpack.c.b16 %v242, %v241
  %v281 = vpack.c.b16 %v244, %v243
  %v282 = vpack.c.b16 %v246, %v245
  %v283 = vpack.c.b16 %v248, %v247
  %v284 = vpack.c.b16 %v250, %v249
  %v285 = vpack.c.b16 %v252, %v251
  %v286 = vpack.c.b16 %v254, %v253
  %319 = vmatprep.subr.bf16.mxu0 0
  %320 = vmatpush1.bf16.msra.mxu0 %v262
  %321 = vmatprep.subr.bf16.mxu0 0
  %322 = vmatpush1.bf16.msra.mxu0 %v261
  %323 = vmatprep.subr.bf16.mxu0 0
  %324 = vmatpush1.bf16.msra.mxu0 %v260
  %325 = vmatprep.subr.bf16.mxu0 0
  %326 = vmatpush1.bf16.msra.mxu0 %v259
  %327 = vmatprep.subr.bf16.mxu0 0
  %328 = vmatpush1.bf16.msra.mxu0 %v258
  %329 = vmatprep.subr.bf16.mxu0 0
  %330 = vmatpush1.bf16.msra.mxu0 %v257
  %331 = vmatprep.subr.bf16.mxu0 0
  %332 = vmatpush1.bf16.msra.mxu0 %v256
  %333 = vmatprep.subr.bf16.mxu0 0
  %334 = vmatpush1.bf16.msra.mxu0 %v255
  %335 = vmatprep.subr.bf16.mxu0 0
  %336 = vmatpush2.bf16.msra.mxu0 %v270
  %337 = vmatprep.subr.bf16.mxu0 0
  %338 = vmatpush2.bf16.msra.mxu0 %v269
  %339 = vmatprep.subr.bf16.mxu0 0
  %340 = vmatpush2.bf16.msra.mxu0 %v268
  %341 = vmatprep.subr.bf16.mxu0 0
  %342 = vmatpush2.bf16.msra.mxu0 %v267
  %343 = vmatprep.subr.bf16.mxu0 0
  %344 = vmatpush2.bf16.msra.mxu0 %v266
  %345 = vmatprep.subr.bf16.mxu0 0
  %346 = vmatpush2.bf16.msra.mxu0 %v265
  %347 = vmatprep.subr.bf16.mxu0 0
  %348 = vmatpush2.bf16.msra.mxu0 %v264
  %349 = vmatprep.subr.bf16.mxu0 0
  %350 = vmatpush2.bf16.msra.mxu0 %v263
  %351 = vmatprep.mubr.bf16.mxu0 %v50
  %352 = vmatmul.mubr.bf16.gmra.mxu0 %v49
  %v353 = vpop.f32.mrf.mxu0
  %v354 = vadd.f32 %v125, %v353
  %v355 = vpop.f32.mrf.mxu0
  %v356 = vpop.f32.mrf.mxu0
  %v357 = vadd.f32 %v125, %v356
  %v358 = vpop.f32.mrf.mxu0
  %359 = vmatprep.mubr.bf16.mxu0 %v54
  %360 = vmatmul.mubr.bf16.gmra.mxu0 %v53
  %v361 = vpop.f32.mrf.mxu0
  %v362 = vadd.f32 %v125, %v361
  %v363 = vpop.f32.mrf.mxu0
  %v364 = vpop.f32.mrf.mxu0
  %v365 = vadd.f32 %v125, %v364
  %v366 = vpop.f32.mrf.mxu0
  %367 = vdwg.mxu0
  %368 = vmatprep.subr.bf16.mxu0 0
  %369 = vmatpush1.bf16.msra.mxu0 %v278
  %370 = vmatprep.subr.bf16.mxu0 0
  %371 = vmatpush1.bf16.msra.mxu0 %v277
  %372 = vmatprep.subr.bf16.mxu0 0
  %373 = vmatpush1.bf16.msra.mxu0 %v276
  %374 = vmatprep.subr.bf16.mxu0 0
  %375 = vmatpush1.bf16.msra.mxu0 %v275
  %376 = vmatprep.subr.bf16.mxu0 0
  %377 = vmatpush1.bf16.msra.mxu0 %v274
  %378 = vmatprep.subr.bf16.mxu0 0
  %379 = vmatpush1.bf16.msra.mxu0 %v273
  %380 = vmatprep.subr.bf16.mxu0 0
  %381 = vmatpush1.bf16.msra.mxu0 %v272
  %382 = vmatprep.subr.bf16.mxu0 0
  %383 = vmatpush1.bf16.msra.mxu0 %v271
  %384 = vmatprep.subr.bf16.mxu0 0
  %385 = vmatpush2.bf16.msra.mxu0 %v286
  %386 = vmatprep.subr.bf16.mxu0 0
  %387 = vmatpush2.bf16.msra.mxu0 %v285
  %388 = vmatprep.subr.bf16.mxu0 0
  %389 = vmatpush2.bf16.msra.mxu0 %v284
  %390 = vmatprep.subr.bf16.mxu0 0
  %391 = vmatpush2.bf16.msra.mxu0 %v283
  %392 = vmatprep.subr.bf16.mxu0 0
  %393 = vmatpush2.bf16.msra.mxu0 %v282
  %394 = vmatprep.subr.bf16.mxu0 0
  %395 = vmatpush2.bf16.msra.mxu0 %v281
  %396 = vmatprep.subr.bf16.mxu0 0
  %397 = vmatpush2.bf16.msra.mxu0 %v280
  %398 = vmatprep.subr.bf16.mxu0 0
  %399 = vmatpush2.bf16.msra.mxu0 %v279
  %400 = vmatprep.mubr.bf16.mxu0 %v52
  %401 = vmatmul.mubr.bf16.gmra.mxu0 %v51
  %v402 = vpop.f32.mrf.mxu0
  %v403 = vadd.f32 %v354, %v402
  %v404 = vpop.f32.mrf.mxu0
  %v405 = vpop.f32.mrf.mxu0
  %v406 = vadd.f32 %v357, %v405
  %v407 = vpop.f32.mrf.mxu0
  %408 = vmatprep.mubr.bf16.mxu0 %v56
  %409 = vmatmul.mubr.bf16.gmra.mxu0 %v55
  %v410 = vpop.f32.mrf.mxu0
  %v411 = vadd.f32 %v362, %v410
  %v412 = vpop.f32.mrf.mxu0
  %v413 = vpop.f32.mrf.mxu0
  %v414 = vadd.f32 %v365, %v413
  %v415 = vpop.f32.mrf.mxu0
  %416 = vdwg.mxu0
  %v417 = vpack.c.bf16 %v406, %v403
  %v418 = vpack.c.bf16 %v414, %v411
  %v419 = vtanh.bf16.pop %v417
  %v420 = vtanh.bf16.pop %v418
  %v421 = vld [vmem:[%s3] sm:$0xf]
  %v422 = vld [vmem:[%s3 + $0x4] sm:$0xf]
  %v423 = vld [vmem:[%s3 + $0x8] sm:$0xf]
  %v424 = vld [vmem:[%s3 + $0xc] sm:$0xf]
  %v425 = vld [vmem:[%s3 + $0x10] sm:$0xf]
  %v426 = vld [vmem:[%s3 + $0x14] sm:$0xf]
  %v427 = vld [vmem:[%s3 + $0x18] sm:$0xf]
  %v428 = vld [vmem:[%s3 + $0x1c] sm:$0xf]
  %v429 = vld [vmem:[%s3 + $0x20] sm:$0xf]
  %v430 = vld [vmem:[%s3 + $0x24] sm:$0xf]
  %v431 = vld [vmem:[%s3 + $0x28] sm:$0xf]
  %v432 = vld [vmem:[%s3 + $0x2c] sm:$0xf]
  %v433 = vld [vmem:[%s3 + $0x30] sm:$0xf]
  %v434 = vld [vmem:[%s3 + $0x34] sm:$0xf]
  %v435 = vld [vmem:[%s3 + $0x38] sm:$0xf]
  %v436 = vld [vmem:[%s3 + $0x3c] sm:$0xf]
  %v438 = vlaneseq
  %v439 = vshrl.u32 %v438, 7
  %v440 = vsub.s32 0, %v439
  %v441 = vrot.slane %v30, %v440
  %v459 = vunpack.c.l.b16 %v421
  %v460 = vunpack.c.l.b16 %v422
  %v461 = vunpack.c.l.b16 %v423
  %v462 = vunpack.c.l.b16 %v424
  %v463 = vunpack.c.l.b16 %v425
  %v464 = vunpack.c.l.b16 %v426
  %v465 = vunpack.c.l.b16 %v427
  %v466 = vunpack.c.l.b16 %v428
  %v467 = vunpack.c.l.b16 %v429
  %v468 = vunpack.c.l.b16 %v430
  %v469 = vunpack.c.l.b16 %v431
  %v470 = vunpack.c.l.b16 %v432
  %v471 = vunpack.c.l.b16 %v433
  %v472 = vunpack.c.l.b16 %v434
  %v473 = vunpack.c.l.b16 %v435
  %v474 = vunpack.c.l.b16 %v436
  %v475 = vpack.c.b16 %v460, %v459
  %v476 = vpack.c.b16 %v462, %v461
  %v477 = vpack.c.b16 %v464, %v463
  %v478 = vpack.c.b16 %v466, %v465
  %v479 = vpack.c.b16 %v468, %v467
  %v480 = vpack.c.b16 %v470, %v469
  %v481 = vpack.c.b16 %v472, %v471
  %v482 = vpack.c.b16 %v474, %v473
  %491 = vmatprep.subr.bf16.mxu0 0
  %492 = vmatpush1.bf16.msra.mxu0 %v482
  %493 = vmatprep.subr.bf16.mxu0 0
  %494 = vmatpush1.bf16.msra.mxu0 %v481
  %495 = vmatprep.subr.bf16.mxu0 0
  %496 = vmatpush1.bf16.msra.mxu0 %v480
  %497 = vmatprep.subr.bf16.mxu0 0
  %498 = vmatpush1.bf16.msra.mxu0 %v479
  %499 = vmatprep.subr.bf16.mxu0 0
  %500 = vmatpush1.bf16.msra.mxu0 %v478
  %501 = vmatprep.subr.bf16.mxu0 0
  %502 = vmatpush1.bf16.msra.mxu0 %v477
  %503 = vmatprep.subr.bf16.mxu0 0
  %504 = vmatpush1.bf16.msra.mxu0 %v476
  %505 = vmatprep.subr.bf16.mxu0 0
  %506 = vmatpush1.bf16.msra.mxu0 %v475
  %507 = vmatprep.subr.bf16.mxu0 0
  %508 = vmatpush2.bf16.msra.mxu0 0
  %509 = vmatprep.subr.bf16.mxu0 0
  %510 = vmatpush2.bf16.msra.mxu0 0
  %511 = vmatprep.subr.bf16.mxu0 0
  %512 = vmatpush2.bf16.msra.mxu0 0
  %513 = vmatprep.subr.bf16.mxu0 0
  %514 = vmatpush2.bf16.msra.mxu0 0
  %515 = vmatprep.subr.bf16.mxu0 0
  %516 = vmatpush2.bf16.msra.mxu0 0
  %517 = vmatprep.subr.bf16.mxu0 0
  %518 = vmatpush2.bf16.msra.mxu0 0
  %519 = vmatprep.subr.bf16.mxu0 0
  %520 = vmatpush2.bf16.msra.mxu0 0
  %521 = vmatprep.subr.bf16.mxu0 0
  %522 = vmatpush2.bf16.msra.mxu0 0
  %523 = vmatprep.mubr.bf16.mxu0 0
  %524 = vmatmul.mubr.bf16.gmra.mxu0 %v419
  %v525 = vpop.f32.mrf.mxu0
  %v526 = vadd.f32 %v441, %v525
  %v527 = vpop.f32.mrf.mxu0
  %v528 = vpop.f32.mrf.mxu0
  %v529 = vadd.f32 %v441, %v528
  %v530 = vpop.f32.mrf.mxu0
  %531 = vmatprep.mubr.bf16.mxu0 0
  %532 = vmatmul.mubr.bf16.gmra.mxu0 %v420
  %v533 = vpop.f32.mrf.mxu0
  %v534 = vadd.f32 %v441, %v533
  %v535 = vpop.f32.mrf.mxu0
  %v536 = vpop.f32.mrf.mxu0
  %v537 = vadd.f32 %v441, %v536
  %v538 = vpop.f32.mrf.mxu0
  %539 = vdwg.mxu0
  %v540 = vpack.c.bf16 %v529, %v526
  %v541 = vpack.c.bf16 %v537, %v534
  %v542 = vtanh.bf16.pop %v540
  %v543 = vtanh.bf16.pop %v541
  %545 = vset.pattern.permute.xlu0 0
  %546 = vperm.xlu0 %545, %v31
  %v547 = vpop.permute.xlu0 %546
  %v549 = vlaneseq
  %v550 = vshrl.u32 %v549, 7
  %v551 = vsub.s32 0, %v550
  %v552 = vrot.slane %v547, %v551
  %vm553 = vcmask 261120
  %v555 = vsel %vm553, %v32, 0
  %v558 = vsel %vm553, %v542, 0
  %v561 = vsel %vm553, %v543, 0
  %563 = vmatprep.subr.bf16.mxu0 0
  %564 = vmatpush1.bf16.xpose.msra.mxu0 0
  %565 = vmatprep.subr.bf16.mxu0 0
  %566 = vmatpush1.bf16.xpose.msra.mxu0 0
  %567 = vmatprep.subr.bf16.mxu0 0
  %568 = vmatpush1.bf16.xpose.msra.mxu0 0
  %569 = vmatprep.subr.bf16.mxu0 0
  %570 = vmatpush1.bf16.xpose.msra.mxu0 0
  %571 = vmatprep.subr.bf16.mxu0 0
  %572 = vmatpush1.bf16.xpose.msra.mxu0 0
  %573 = vmatprep.subr.bf16.mxu0 0
  %574 = vmatpush1.bf16.xpose.msra.mxu0 0
  %575 = vmatprep.subr.bf16.mxu0 0
  %576 = vmatpush1.bf16.xpose.msra.mxu0 %v561
  %577 = vmatprep.subr.bf16.mxu0 0
  %578 = vmatpush1.bf16.xpose.msra.mxu0 %v558
  %579 = vmatprep.subr.bf16.mxu0 0
  %580 = vmatpush2.bf16.xpose.msra.mxu0 0
  %581 = vmatprep.subr.bf16.mxu0 0
  %582 = vmatpush2.bf16.xpose.msra.mxu0 0
  %583 = vmatprep.subr.bf16.mxu0 0
  %584 = vmatpush2.bf16.xpose.msra.mxu0 0
  %585 = vmatprep.subr.bf16.mxu0 0
  %586 = vmatpush2.bf16.xpose.msra.mxu0 0
  %587 = vmatprep.subr.bf16.mxu0 0
  %588 = vmatpush2.bf16.xpose.msra.mxu0 0
  %589 = vmatprep.subr.bf16.mxu0 0
  %590 = vmatpush2.bf16.xpose.msra.mxu0 0
  %591 = vmatprep.subr.bf16.mxu0 0
  %592 = vmatpush2.bf16.xpose.msra.mxu0 0
  %593 = vmatprep.subr.bf16.mxu0 0
  %594 = vmatpush2.bf16.xpose.msra.mxu0 0
  %595 = vmatprep.mubr.bf16.mxu0 0
  %596 = vmatmul.mubr.bf16.gmra.mxu0 %v555
  %v597 = vpop.f32.mrf.mxu0
  %v598 = vadd.f32 %v552, %v597
  %v599 = vpop.f32.mrf.mxu0
  %v600 = vpop.f32.mrf.mxu0
  %v601 = vpop.f32.mrf.mxu0
  %602 = vdwg.mxu0
  %vm603 = vcmask 253952
  %604 = vst.msk [vmem:[%s7] sm:$0x1] %vm603, %v598
  // Predicated region
  $region30: #{_propnet_forward_impl.1} parent=0 // pred_check
    _
  $region31: #{_propnet_forward_impl.1} parent=0 // pred_check_branch
    %606 = sbr.rel (0) target = $region33
  $region32: #{_propnet_forward_impl.1} parent=0 // pred_region
    _
  $region33: #{_propnet_forward_impl.1} parent=0 // pred_fallthru
    _
  // Predicated region
  $region34: #{_propnet_forward_impl.1} parent=0 // pred_check
    _
  $region35: #{_propnet_forward_impl.1} parent=0 // pred_check_branch
    %608 = sbr.rel (0) target = $region37
  $region36: #{_propnet_forward_impl.1} parent=0 // pred_region
    _
  $region37: #{_propnet_forward_impl.1} parent=0 // pred_fallthru
    _

</llo_original>
